<compile_context>
chip_gen: v6e
topology: v6e:2x2x1
jax: 0.10.0
libtpu: 0.0.40
codegen_flags: <defaults>
</compile_context>

<pallas_src>
import jax
import jax.numpy as jnp
from jax.experimental import pallas as pl
from jax.experimental.pallas import tpu as pltpu

IN_DIM = 11
HID_DIM = 64
OUT_DIM = 16
PACK = 8                     # batch rows packed into the lane axis
SUBLANE = 8                  # sublane alignment for the grouped-row axis
DEFAULT_BATCH_TILE = 16384   # rows per grid step (sweep 8192-32768)


def _mlp_kernel(x_ref, w1_ref, b1_ref, w2_ref, b2_ref, o_ref):
    # In-kernel f32 -> bf16 cast of the input (saves a wrapper-side HBM pass).
    x = x_ref[...].astype(jnp.bfloat16)

    # fc1 + bias + relu: bf16 operands on the MXU, f32 accumulation.
    h = jnp.dot(x, w1_ref[...], preferred_element_type=jnp.float32)
    h = jnp.maximum(h + b1_ref[...], 0.0)           # f32 epilogue (v5e-safe)

    # Dropout(p=0.2): identity at inference (nn.Dropout is a no-op in eval()).

    # fc2 + bias + relu, stored as bf16 (halves the output HBM stream).
    y = jnp.dot(h.astype(jnp.bfloat16), w2_ref[...],
                preferred_element_type=jnp.float32)
    o_ref[...] = jnp.maximum(y + b2_ref[...], 0.0).astype(o_ref.dtype)


def _block_diag(w, reps):
    """reps-way block-diagonal expansion of w: (K, N) -> (reps*K, reps*N)."""
    k, n = w.shape
    out = jnp.zeros((reps * k, reps * n), w.dtype)
    for r in range(reps):
        out = out.at[r * k:(r + 1) * k, r * n:(r + 1) * n].set(w)
    return out


def pack_params(w1, b1, w2, b2):
    """One-time weight/bias packing (hoisted out of the per-call path)."""
    w1g = _block_diag(w1.astype(jnp.bfloat16), PACK)              # (88, 512)
    w2g = _block_diag(w2.astype(jnp.bfloat16), PACK)              # (512, 128)
    b1g = jnp.tile(b1.reshape(1, HID_DIM).astype(jnp.float32), (1, PACK))
    b2g = jnp.tile(b2.reshape(1, OUT_DIM).astype(jnp.float32), (1, PACK))
    return w1g, b1g, w2g, b2g


def _choose_group_tile(gb, batch_tile):
    """Pick the grouped-row tile size (multiple of 8, or the full extent)."""
    gt_cap = max(SUBLANE, ((batch_tile // PACK) // SUBLANE) * SUBLANE)
    if gb < 2 * SUBLANE:
        return gb  # single full-extent block (block dim == array dim is legal)
    # >=2 grid steps keeps both TensorCores busy on v7x; the extra ~0.35 us
    # step is negligible on single-TC v5e/v6e.
    n_steps = max(2, pl.cdiv(gb, gt_cap))
    gt = pl.cdiv(gb, n_steps)
    gt = ((gt + SUBLANE - 1) // SUBLANE) * SUBLANE
    return min(gt, gt_cap)


def mm_clin_encoder(x, w1g, b1g, w2g, b2g, *, batch_tile=DEFAULT_BATCH_TILE):
    """x: (B, 11) f32 -> (B, 16) bf16.  Weights come from pack_params()."""
    B = x.shape[0]

    # Pad only to a multiple of PACK (<=7 rows) so the lane-packing reshape is
    # legal; no full-tile padding (partial last block handled by the grid).
    pad = (-B) % PACK
    if pad:
        x = jnp.pad(x, ((0, pad), (0, 0)))
    b8 = B + pad
    gb = b8 // PACK

    # Lane-dense packing: 8 rows per grouped row (free row-major reshape),
    # kept in f32 -- the bf16 cast happens inside the kernel.
    xg = x.reshape(gb, PACK * IN_DIM)                              # (gb, 88) f32

    gt = _choose_group_tile(gb, batch_tile)
    grid_steps = pl.cdiv(gb, gt)

    out = pl.pallas_call(
        _mlp_kernel,
        out_shape=jax.ShapeDtypeStruct((gb, PACK * OUT_DIM), jnp.bfloat16),
        grid_spec=pltpu.PrefetchScalarGridSpec(
            num_scalar_prefetch=0,
            grid=(grid_steps,),
            in_specs=[
                pl.BlockSpec((gt, PACK * IN_DIM), lambda i: (i, 0)),           # x (f32)
                pl.BlockSpec((PACK * IN_DIM, PACK * HID_DIM), lambda i: (0, 0)),  # w1g
                pl.BlockSpec((1, PACK * HID_DIM), lambda i: (0, 0)),           # b1g
                pl.BlockSpec((PACK * HID_DIM, PACK * OUT_DIM), lambda i: (0, 0)),  # w2g
                pl.BlockSpec((1, PACK * OUT_DIM), lambda i: (0, 0)),           # b2g
            ],
            out_specs=pl.BlockSpec((gt, PACK * OUT_DIM), lambda i: (i, 0)),
        ),
        compiler_params=pltpu.CompilerParams(
            dimension_semantics=("parallel",)),
    )(xg, w1g, b1g, w2g, b2g)

    # (gb, 128) -> (b8, 16) is a free row-major reshape; drop padded rows.
    # Output is bf16; cast to f32 outside only if a consumer needs it.
    return out.reshape(b8, OUT_DIM)[:B]


def init_params(key):
    """Deterministic init mimicking nn.Linear's U(-1/sqrt(fan_in), 1/sqrt(fan_in))."""
    k1, k2, k3, k4 = jax.random.split(key, 4)
    lim1 = 1.0 / jnp.sqrt(jnp.float32(IN_DIM))
    lim2 = 1.0 / jnp.sqrt(jnp.float32(HID_DIM))
    w1 = jax.random.uniform(k1, (IN_DIM, HID_DIM), jnp.float32, -lim1, lim1)
    b1 = jax.random.uniform(k2, (1, HID_DIM), jnp.float32, -lim1, lim1)
    w2 = jax.random.uniform(k3, (HID_DIM, OUT_DIM), jnp.float32, -lim2, lim2)
    b2 = jax.random.uniform(k4, (1, OUT_DIM), jnp.float32, -lim2, lim2)
    return w1, b1, w2, b2


def reference(x, w1, b1, w2, b2):
    h = jnp.maximum(x @ w1 + b1, 0.0)
    return jnp.maximum(h @ w2 + b2, 0.0)


if __name__ == "__main__":
    key = jax.random.PRNGKey(0)
    kx, kp = jax.random.split(key)
    # Ragged small batch: exercises the <=7-row PACK padding, the >=2-step
    # grid split (v7x megacore path) and a partial last block.
    B = 530
    x = jax.random.normal(kx, (B, IN_DIM), jnp.float32)
    w1, b1, w2, b2 = init_params(kp)

    packed = pack_params(w1, b1, w2, b2)          # one-time weight packing
    fwd = jax.jit(lambda xx: mm_clin_encoder(xx, *packed))

    out = jax.block_until_ready(fwd(x))

    ref = reference(x, w1, b1, w2, b2)
    assert out.shape == (B, OUT_DIM)
    assert out.dtype == jnp.bfloat16
    # bf16 MXU operands + bf16 output (f32 accumulation): compare against the
    # f32 reference with a correspondingly looser tolerance.
    assert jnp.allclose(out.astype(jnp.float32), ref, atol=3e-2, rtol=3e-2), \
        "mismatch vs reference"
    print("KERNEL_OK")
</pallas_src>

<mosaic_0001>
module attributes {stable_mosaic.version = 11 : i64} {
  func.func @_mlp_kernel(%arg0: i32, %arg1: memref<40x88xf32, #tpu.memory_space<vmem>>, %arg2: memref<88x512xbf16, #tpu.memory_space<vmem>>, %arg3: memref<1x512xf32, #tpu.memory_space<vmem>>, %arg4: memref<512x128xbf16, #tpu.memory_space<vmem>>, %arg5: memref<1x128xf32, #tpu.memory_space<vmem>>, %arg6: memref<40x128xbf16, #tpu.memory_space<vmem>>) attributes {dimension_semantics = [#tpu.dimension_semantics<parallel>], iteration_bounds = array<i64: 2>, scalar_prefetch = 0 : i64, scratch_operands = 0 : i64, tpu.core_type = #tpu.core_type<tc>, window_params = [{transform_indices = @transform_0, window_bounds = array<i64: 40, 88>}, {pipeline_mode = #tpu.pipeline_mode<synchronous>, transform_indices = @transform_1, window_bounds = array<i64: 88, 512>}, {pipeline_mode = #tpu.pipeline_mode<synchronous>, transform_indices = @transform_2, window_bounds = array<i64: 1, 512>}, {pipeline_mode = #tpu.pipeline_mode<synchronous>, transform_indices = @transform_3, window_bounds = array<i64: 512, 128>}, {pipeline_mode = #tpu.pipeline_mode<synchronous>, transform_indices = @transform_4, window_bounds = array<i64: 1, 128>}, {transform_indices = @transform_5, window_bounds = array<i64: 40, 128>}]} {
    %c0 = arith.constant 0 : index
    %c0_0 = arith.constant 0 : index
    %0 = vector.load %arg1[%c0, %c0_0] : memref<40x88xf32, #tpu.memory_space<vmem>>, vector<40x88xf32>
    %1 = arith.truncf %0 : vector<40x88xf32> to vector<40x88xbf16>
    %c0_1 = arith.constant 0 : index
    %c0_2 = arith.constant 0 : index
    %2 = vector.load %arg2[%c0_1, %c0_2] : memref<88x512xbf16, #tpu.memory_space<vmem>>, vector<88x512xbf16>
    %cst = arith.constant dense<0.000000e+00> : vector<40x512xf32>
    %3 = tpu.matmul %1, %2, %cst {dimension_numbers = #tpu.dot_dimension_numbers<[1], [0], [0], [1], [0, 0, 1, 1], [], []>} : vector<40x88xbf16>, vector<88x512xbf16>, vector<40x512xf32> -> vector<40x512xf32>
    %c0_3 = arith.constant 0 : index
    %c0_4 = arith.constant 0 : index
    %4 = vector.load %arg3[%c0_3, %c0_4] : memref<1x512xf32, #tpu.memory_space<vmem>>, vector<1x512xf32>
    %5 = vector.broadcast %4 : vector<1x512xf32> to vector<40x512xf32>
    %6 = arith.addf %3, %5 : vector<40x512xf32>
    %cst_5 = arith.constant 0.000000e+00 : f32
    %7 = vector.broadcast %cst_5 : f32 to vector<40x512xf32>
    %8 = arith.maximumf %6, %7 : vector<40x512xf32>
    %9 = arith.truncf %8 : vector<40x512xf32> to vector<40x512xbf16>
    %c0_6 = arith.constant 0 : index
    %c0_7 = arith.constant 0 : index
    %10 = vector.load %arg4[%c0_6, %c0_7] : memref<512x128xbf16, #tpu.memory_space<vmem>>, vector<512x128xbf16>
    %cst_8 = arith.constant dense<0.000000e+00> : vector<40x128xf32>
    %11 = tpu.matmul %9, %10, %cst_8 {dimension_numbers = #tpu.dot_dimension_numbers<[1], [0], [0], [1], [0, 0, 1, 1], [], []>} : vector<40x512xbf16>, vector<512x128xbf16>, vector<40x128xf32> -> vector<40x128xf32>
    %c0_9 = arith.constant 0 : index
    %c0_10 = arith.constant 0 : index
    %12 = vector.load %arg5[%c0_9, %c0_10] : memref<1x128xf32, #tpu.memory_space<vmem>>, vector<1x128xf32>
    %13 = vector.broadcast %12 : vector<1x128xf32> to vector<40x128xf32>
    %14 = arith.addf %11, %13 : vector<40x128xf32>
    %cst_11 = arith.constant 0.000000e+00 : f32
    %15 = vector.broadcast %cst_11 : f32 to vector<40x128xf32>
    %16 = arith.maximumf %14, %15 : vector<40x128xf32>
    %17 = arith.truncf %16 : vector<40x128xf32> to vector<40x128xbf16>
    %c0_12 = arith.constant 0 : index
    %c0_13 = arith.constant 0 : index
    %18 = vector.load %arg6[%c0_12, %c0_13] : memref<40x128xbf16, #tpu.memory_space<vmem>>, vector<40x128xbf16>
    tpu.vector_store %arg6[%c0_12, %c0_13], %17 {strides = array<i32>} : memref<40x128xbf16, #tpu.memory_space<vmem>>, vector<40x128xbf16>,
    return
  }
  func.func @transform_0(%arg0: i32) -> (i32, i32) {
    %c0_i32 = arith.constant 0 : i32
    %c0_i32_0 = arith.constant 0 : i32
    return %arg0, %c0_i32 : i32, i32
  }
  func.func @transform_1(%arg0: i32) -> (i32, i32) {
    %c0_i32 = arith.constant 0 : i32
    %c0_i32_0 = arith.constant 0 : i32
    %c0_i32_1 = arith.constant 0 : i32
    return %c0_i32, %c0_i32_0 : i32, i32
  }
  func.func @transform_2(%arg0: i32) -> (i32, i32) {
    %c0_i32 = arith.constant 0 : i32
    %c0_i32_0 = arith.constant 0 : i32
    %c0_i32_1 = arith.constant 0 : i32
    return %c0_i32, %c0_i32_0 : i32, i32
  }
  func.func @transform_3(%arg0: i32) -> (i32, i32) {
    %c0_i32 = arith.constant 0 : i32
    %c0_i32_0 = arith.constant 0 : i32
    %c0_i32_1 = arith.constant 0 : i32
    return %c0_i32, %c0_i32_0 : i32, i32
  }
  func.func @transform_4(%arg0: i32) -> (i32, i32) {
    %c0_i32 = arith.constant 0 : i32
    %c0_i32_0 = arith.constant 0 : i32
    %c0_i32_1 = arith.constant 0 : i32
    return %c0_i32, %c0_i32_0 : i32, i32
  }
  func.func @transform_5(%arg0: i32) -> (i32, i32) {
    %c0_i32 = arith.constant 0 : i32
    %c0_i32_0 = arith.constant 0 : i32
    return %arg0, %c0_i32 : i32, i32
  }
}

</mosaic_0001>

<llo_original>
// kernel: _lambda_.1
$region0: #{_lambda_.1}
  #allocation0 [shape = 'u32[]', space=smem, size = 0x4, offset = 0x4, fixed_abs, tag = 'smem constant byte address 0x4 - core index']
  #allocation1 [shape = 'u32[144,128]{1,0:T(1,128)}', space=vmem, size = 0x12000, scoped, tag = 'internal scratch']
  %s0 = inlined_call_operand.vmem [shape: f32[67,88], index: 0, kind: input, shape index: {}]
  %s1 = inlined_call_operand.vmem [shape: bf16[88,512], index: 1, kind: input, shape index: {}]
  %s2 = inlined_call_operand.vmem [shape: f32[1,512], index: 2, kind: input, shape index: {}]
  %s3 = inlined_call_operand.vmem [shape: bf16[512,128], index: 3, kind: input, shape index: {}]
  %s4 = inlined_call_operand.vmem [shape: f32[1,128], index: 4, kind: input, shape index: {}]
  %s5 = inlined_call_operand.vmem [shape: bf16[67,128], index: 5, kind: output, shape index: {}]
  %s6 = sld [smem:[#allocation0]]
  $region97: #{_lambda_.1} parent=0
    _
  %s8 = ssub.s32 1, %s6
  %s9 = scalar_select 0, %s8, %s6
  $region1: #{_lambda_.1} parent=0
    #allocation2 [shape = 'u8[20480]{0}', space=vmem, size = 0x5000, scoped, tag = 'output window, operand 0']
    loop: start=0, step=1, limit=4
    $region2: #{_lambda_.1} parent=1 // loop_pre_header
      _
    $region3: #{_lambda_.1} parent=1 // loop_header
      %s11 = sphi 0, %s15
      %p12 = scmp.ge.s32.totalorder %s11, 4
      %s21 = sphi 0, %s23
      %s24 = sphi 0, %s21
      %s25 = sphi 0, %s24
      %s41 = sphi 0, %s25
      %s45 = sphi 0, %s45
      %s47 = sphi 0, %s45
      %s48 = sphi 0, %s47
      %s62 = sphi 0, %s48
      %s66 = sphi 0, %s66
      %s68 = sphi 0, %s66
      %s69 = sphi 0, %s68
      %s83 = sphi 0, %s69
      %s87 = sphi 0, %s87
      %s89 = sphi 0, %s87
      %s90 = sphi 0, %s89
      %s104 = sphi 0, %s90
      %s108 = sphi 0, %s108
      %s110 = sphi 0, %s108
      %s111 = sphi 0, %s110
      %s125 = sphi 0, %s111
      %s131 = sphi 0, %s133
      %s134 = sphi 0, %s131
      %s135 = sphi 0, %s134
      %s151 = sphi 0, %s135
    $region4: #{_lambda_.1} parent=1 // loop_header_branch
      %14 = sbr.rel (%p12) target = $region8
    $region5: #{_lambda_.1} parent=1 // loop_body
      %s16 = ssub.s32 %s11, 1
      %s17 = ssub.s32 %s11, 2
      %s18 = sadd.s32 %s11, 1
      %s19 = ssub.s32 %s11, %s18
      %p20 = scmp.eq.s32.totalorder %s19, 0
      %s22 = sadd.s32 %s21, 1
      %s23 = scalar_select %p20, %s21, %s22
      %p26 = pneg %p20
      %p27 = scmp.eq.s32.totalorder %s11, 1
      %p28 = por %p26, %p27
      %p29 = scmp.ne.s32.totalorder %s21, %s24
      %p30 = scmp.eq.s32.totalorder %s11, 0
      %p31 = por %p29, %p30
      %p32 = scmp.ne.s32.totalorder %s21, %s24
      %p33 = scmp.eq.s32.totalorder %s16, 1
      %p34 = por %p32, %p33
      %p35 = scmp.ne.s32.totalorder %s24, %s25
      %p36 = scmp.eq.s32.totalorder %s16, 0
      %p37 = por %p35, %p36
      %p38 = scmp.ne.s32.totalorder %s24, %s25
      %p39 = scmp.eq.s32.totalorder %s17, 1
      %p40 = por %p38, %p39
      %p42 = scmp.ne.s32.totalorder %s25, %s41
      %p43 = scmp.eq.s32.totalorder %s17, 0
      %p44 = por %p42, %p43
      %s46 = sadd.s32 %s45, 1
      %p49 = scmp.eq.s32.totalorder %s11, 1
      %p50 = scmp.ne.s32.totalorder %s45, %s47
      %p51 = scmp.eq.s32.totalorder %s11, 0
      %p52 = por %p50, %p51
      %p53 = scmp.ne.s32.totalorder %s45, %s47
      %p54 = scmp.eq.s32.totalorder %s16, 1
      %p55 = por %p53, %p54
      %p56 = scmp.ne.s32.totalorder %s47, %s48
      %p57 = scmp.eq.s32.totalorder %s16, 0
      %p58 = por %p56, %p57
      %p59 = scmp.ne.s32.totalorder %s47, %s48
      %p60 = scmp.eq.s32.totalorder %s17, 1
      %p61 = por %p59, %p60
      %p63 = scmp.ne.s32.totalorder %s48, %s62
      %p64 = scmp.eq.s32.totalorder %s17, 0
      %p65 = por %p63, %p64
      %s67 = sadd.s32 %s66, 1
      %p70 = scmp.eq.s32.totalorder %s11, 1
      %p71 = scmp.ne.s32.totalorder %s66, %s68
      %p72 = scmp.eq.s32.totalorder %s11, 0
      %p73 = por %p71, %p72
      %p74 = scmp.ne.s32.totalorder %s66, %s68
      %p75 = scmp.eq.s32.totalorder %s16, 1
      %p76 = por %p74, %p75
      %p77 = scmp.ne.s32.totalorder %s68, %s69
      %p78 = scmp.eq.s32.totalorder %s16, 0
      %p79 = por %p77, %p78
      %p80 = scmp.ne.s32.totalorder %s68, %s69
      %p81 = scmp.eq.s32.totalorder %s17, 1
      %p82 = por %p80, %p81
      %p84 = scmp.ne.s32.totalorder %s69, %s83
      %p85 = scmp.eq.s32.totalorder %s17, 0
      %p86 = por %p84, %p85
      %s88 = sadd.s32 %s87, 1
      %p91 = scmp.eq.s32.totalorder %s11, 1
      %p92 = scmp.ne.s32.totalorder %s87, %s89
      %p93 = scmp.eq.s32.totalorder %s11, 0
      %p94 = por %p92, %p93
      %p95 = scmp.ne.s32.totalorder %s87, %s89
      %p96 = scmp.eq.s32.totalorder %s16, 1
      %p97 = por %p95, %p96
      %p98 = scmp.ne.s32.totalorder %s89, %s90
      %p99 = scmp.eq.s32.totalorder %s16, 0
      %p100 = por %p98, %p99
      %p101 = scmp.ne.s32.totalorder %s89, %s90
      %p102 = scmp.eq.s32.totalorder %s17, 1
      %p103 = por %p101, %p102
      %p105 = scmp.ne.s32.totalorder %s90, %s104
      %p106 = scmp.eq.s32.totalorder %s17, 0
      %p107 = por %p105, %p106
      %s109 = sadd.s32 %s108, 1
      %p112 = scmp.eq.s32.totalorder %s11, 1
      %p113 = scmp.ne.s32.totalorder %s108, %s110
      %p114 = scmp.eq.s32.totalorder %s11, 0
      %p115 = por %p113, %p114
      %p116 = scmp.ne.s32.totalorder %s108, %s110
      %p117 = scmp.eq.s32.totalorder %s16, 1
      %p118 = por %p116, %p117
      %p119 = scmp.ne.s32.totalorder %s110, %s111
      %p120 = scmp.eq.s32.totalorder %s16, 0
      %p121 = por %p119, %p120
      %p122 = scmp.ne.s32.totalorder %s110, %s111
      %p123 = scmp.eq.s32.totalorder %s17, 1
      %p124 = por %p122, %p123
      %p126 = scmp.ne.s32.totalorder %s111, %s125
      %p127 = scmp.eq.s32.totalorder %s17, 0
      %p128 = por %p126, %p127
      %s129 = ssub.s32 %s11, %s18
      %p130 = scmp.eq.s32.totalorder %s129, 0
      %s132 = sadd.s32 %s131, 1
      %s133 = scalar_select %p130, %s131, %s132
      %p136 = pneg %p130
      %p137 = scmp.eq.s32.totalorder %s11, 1
      %p138 = por %p136, %p137
      %p139 = scmp.ne.s32.totalorder %s131, %s134
      %p140 = scmp.eq.s32.totalorder %s11, 0
      %p141 = por %p139, %p140
      %p142 = scmp.ne.s32.totalorder %s131, %s134
      %p143 = scmp.eq.s32.totalorder %s16, 1
      %p144 = por %p142, %p143
      %p145 = scmp.ne.s32.totalorder %s134, %s135
      %p146 = scmp.eq.s32.totalorder %s16, 0
      %p147 = por %p145, %p146
      %p148 = scmp.ne.s32.totalorder %s134, %s135
      %p149 = scmp.eq.s32.totalorder %s17, 1
      %p150 = por %p148, %p149
      %p152 = scmp.ne.s32.totalorder %s135, %s151
      %p153 = scmp.eq.s32.totalorder %s17, 0
      %p154 = por %p152, %p153
      %p155 = scmp.le.s32.totalorder 1, %s11
      %p156 = scmp.lt.s32.totalorder %s11, 3
      %p157 = pnand %p155, %p156
      %p158 = pneg %p157
      // Predicated region
      $region9: #{_lambda_.1} parent=5 // pred_check
        _
      $region10: #{_lambda_.1} parent=5 // pred_check_branch
        %160 = sbr.rel (%p157) target = $region12
      $region11: #{_lambda_.1} parent=5 // pred_region
        %s161 = ssub.s32 %s11, 1
        // Predicated region
        $region13: #{_lambda_.1} parent=11 // pred_check
          %p162 = pneg %p58
        $region14: #{_lambda_.1} parent=11 // pred_check_branch
          %164 = sbr.rel (%p162) target = $region16
        $region15: #{_lambda_.1} parent=11 // pred_region
          _
        $region16: #{_lambda_.1} parent=11 // pred_fallthru
          _
        // Predicated region
        $region17: #{_lambda_.1} parent=11 // pred_check
          %p165 = pneg %p79
        $region18: #{_lambda_.1} parent=11 // pred_check_branch
          %167 = sbr.rel (%p165) target = $region20
        $region19: #{_lambda_.1} parent=11 // pred_region
          _
        $region20: #{_lambda_.1} parent=11 // pred_fallthru
          _
        // Predicated region
        $region21: #{_lambda_.1} parent=11 // pred_check
          %p168 = pneg %p100
        $region22: #{_lambda_.1} parent=11 // pred_check_branch
          %170 = sbr.rel (%p168) target = $region24
        $region23: #{_lambda_.1} parent=11 // pred_region
          _
        $region24: #{_lambda_.1} parent=11 // pred_fallthru
          _
        // Predicated region
        $region25: #{_lambda_.1} parent=11 // pred_check
          %p171 = pneg %p121
        $region26: #{_lambda_.1} parent=11 // pred_check_branch
          %173 = sbr.rel (%p171) target = $region28
        $region27: #{_lambda_.1} parent=11 // pred_region
          _
        $region28: #{_lambda_.1} parent=11 // pred_fallthru
          _
      $region12: #{_lambda_.1} parent=5 // pred_fallthru
        _
      %p174 = scmp.lt.s32.totalorder %s11, 2
      // Predicated region
      $region29: #{_lambda_.1} parent=5 // pred_check
        %p175 = pneg %p174
      $region30: #{_lambda_.1} parent=5 // pred_check_branch
        %177 = sbr.rel (%p175) target = $region32
      $region31: #{_lambda_.1} parent=5 // pred_region
        // Predicated region
        $region33: #{_lambda_.1} parent=31 // pred_check
          %p178 = pneg %p31
        $region34: #{_lambda_.1} parent=31 // pred_check_branch
          %180 = sbr.rel (%p178) target = $region36
        $region35: #{_lambda_.1} parent=31 // pred_region
          %s181 = smul.u32 5, %s11
          %s182 = ssub.s32 9, %s181
          %p183 = scmp.lt.s32.totalorder %s182, 5
          %s184 = scalar_select %p183, %s182, 5
          %s185 = smul.u32 128, %s184
          %p186 = scmp.lt.s32.totalorder %s181, 8
          %s187 = scalar_select %p186, %s181, 8
          %s188 = smul.addr %s187, 8
          %s189 = scalar_lea.vmem %s0, %s188
          %s190 = smul.u32 5, %s11
          %s191 = ssub.s32 9, %s190
          %p192 = scmp.lt.s32.totalorder %s191, 5
          %s193 = scalar_select %p192, %s191, 5
          %s194 = smul.u32 128, %s193
        $region36: #{_lambda_.1} parent=31 // pred_fallthru
          _
      $region32: #{_lambda_.1} parent=5 // pred_fallthru
        _
      %p195 = scmp.le.s32.totalorder 1, %s11
      %p196 = scmp.lt.s32.totalorder %s11, 3
      %p197 = pnand %p195, %p196
      %p198 = pneg %p197
      // Predicated region
      $region37: #{_lambda_.1} parent=5 // pred_check
        _
      $region38: #{_lambda_.1} parent=5 // pred_check_branch
        %200 = sbr.rel (%p197) target = $region40
      $region39: #{_lambda_.1} parent=5 // pred_region
        %s201 = ssub.s32 %s11, 1
        %s202 = smul.u32 5, %s16
        %s203 = ssub.s32 9, %s202
        %p204 = scmp.lt.s32.totalorder %s203, 5
        %s205 = scalar_select %p204, %s203, 5
        %s206 = smul.u32 128, %s205
        %p207 = scmp.lt.s32.totalorder %s202, 8
        %s208 = scalar_select %p207, %s202, 8
        %s209 = smul.addr %s208, 8
        %s210 = scalar_lea.vmem %s0, %s209
        %p211 = pneg %p37
        %p212 = pneg %p34
        %p213 = pneg %p58
        %p214 = pneg %p55
        %p215 = pneg %p79
        %p216 = pneg %p76
        %p217 = pneg %p100
        %p218 = pneg %p97
        %p219 = pneg %p121
        %p220 = pneg %p118
        %p221 = pneg %p147
        %p222 = pneg %p144
        %s223 = sand.u32 %s134, 1
        %s224 = sand.u32 %s134, 1
        %s225 = smul.addr %s224, 20
        %s226 = scalar_lea.vmem [#allocation2], %s225
        %s227 = smul.u32 5, %s16
        %s228 = ssub.s32 9, %s227
        %p229 = scmp.lt.s32.totalorder %s228, 5
        %s230 = scalar_select %p229, %s228, 5
        %s231 = smul.u32 128, %s230
        %p232 = scmp.lt.s32.totalorder %s227, 8
        %s233 = scalar_select %p232, %s227, 8
        %s234 = smul.addr %s233, 8
        %s235 = scalar_lea.vmem %s0, %s234
        %s236 = smul.u32 5, %s16
        %s237 = ssub.s32 9, %s236
        %p238 = scmp.lt.s32.totalorder %s237, 5
        %s239 = scalar_select %p238, %s237, 5
        %s240 = smul.u32 128, %s239
        %s241 = smul.u32 5, %s16
        %s242 = ssub.s32 9, %s241
        %p243 = scmp.lt.s32.totalorder %s242, 5
        %s244 = scalar_select %p243, %s242, 5
        %s245 = smul.u32 64, %s244
        %v247 = vld [vmem:[%s235] sm:$0xff]
        %v248 = vld [vmem:[%s235 + $0x8] sm:$0xff]
        %v249 = vld [vmem:[%s235 + $0x10] sm:$0xff]
        %v250 = vld [vmem:[%s235 + $0x18] sm:$0xff]
        %v251 = vld [vmem:[%s235 + $0x20] sm:$0xff]
        %v252 = vpack.c.bf16 %v248, %v247
        %v253 = vpack.c.bf16 %v250, %v249
        %v254 = vpack.c.bf16 %v251, %v251
        %v255 = vld [vmem:[%s1] sm:$0xff]
        %v256 = vld [vmem:[%s1 + $0x8] sm:$0xff]
        %v257 = vld [vmem:[%s1 + $0x10] sm:$0xff]
        %v258 = vld [vmem:[%s1 + $0x18] sm:$0xff]
        %v259 = vld [vmem:[%s1 + $0x20] sm:$0xff]
        %v260 = vld [vmem:[%s1 + $0x28] sm:$0xff]
        %v261 = vld [vmem:[%s1 + $0x30] sm:$0xff]
        %v262 = vld [vmem:[%s1 + $0x38] sm:$0xff]
        %v263 = vld [vmem:[%s1 + $0x40] sm:$0xff]
        %v264 = vld [vmem:[%s1 + $0x48] sm:$0xff]
        %v265 = vld [vmem:[%s1 + $0x50] sm:$0xff]
        %v266 = vld [vmem:[%s1 + $0x58] sm:$0xff]
        %v267 = vld [vmem:[%s1 + $0x60] sm:$0xff]
        %v268 = vld [vmem:[%s1 + $0x68] sm:$0xff]
        %v269 = vld [vmem:[%s1 + $0x70] sm:$0xff]
        %v270 = vld [vmem:[%s1 + $0x78] sm:$0xff]
        %v271 = vld [vmem:[%s1 + $0x80] sm:$0xff]
        %v272 = vld [vmem:[%s1 + $0x88] sm:$0xff]
        %v273 = vld [vmem:[%s1 + $0x90] sm:$0xff]
        %v274 = vld [vmem:[%s1 + $0x98] sm:$0xff]
        %v275 = vld [vmem:[%s1 + $0xa0] sm:$0xff]
        %v276 = vld [vmem:[%s1 + $0xa8] sm:$0xff]
        %v277 = vld [vmem:[%s2] sm:$0xf]
        %v279 = vlaneseq
        %v280 = vshrl.u32 %v279, 7
        %v281 = vsub.s32 0, %v280
        %v282 = vrot.slane %v277, %v281
        %v283 = vlaneseq
        %v284 = vshrl.u32 %v283, 7
        %v285 = vsub.s32 1, %v284
        %v286 = vrot.slane %v277, %v285
        %v287 = vlaneseq
        %v288 = vshrl.u32 %v287, 7
        %v289 = vsub.s32 2, %v288
        %v290 = vrot.slane %v277, %v289
        %v291 = vlaneseq
        %v292 = vshrl.u32 %v291, 7
        %v293 = vsub.s32 3, %v292
        %v294 = vrot.slane %v277, %v293
        %v321 = vunpack.c.l.b16 %v255
        %v322 = vunpack.c.h.b16 %v255
        %v323 = vunpack.c.l.b16 %v256
        %v324 = vunpack.c.h.b16 %v256
        %v325 = vunpack.c.l.b16 %v257
        %v326 = vunpack.c.h.b16 %v257
        %v327 = vunpack.c.l.b16 %v258
        %v328 = vunpack.c.h.b16 %v258
        %v329 = vunpack.c.l.b16 %v259
        %v330 = vunpack.c.h.b16 %v259
        %v331 = vunpack.c.l.b16 %v260
        %v332 = vunpack.c.h.b16 %v260
        %v333 = vunpack.c.l.b16 %v261
        %v334 = vunpack.c.h.b16 %v261
        %v335 = vunpack.c.l.b16 %v262
        %v336 = vunpack.c.h.b16 %v262
        %v337 = vunpack.c.l.b16 %v263
        %v338 = vunpack.c.h.b16 %v263
        %v339 = vunpack.c.l.b16 %v264
        %v340 = vunpack.c.h.b16 %v264
        %v341 = vunpack.c.l.b16 %v265
        %v342 = vunpack.c.h.b16 %v265
        %v343 = vunpack.c.l.b16 %v266
        %v344 = vunpack.c.h.b16 %v266
        %v345 = vunpack.c.l.b16 %v267
        %v346 = vunpack.c.h.b16 %v267
        %v347 = vunpack.c.l.b16 %v268
        %v348 = vunpack.c.h.b16 %v268
        %v349 = vunpack.c.l.b16 %v269
        %v350 = vunpack.c.h.b16 %v269
        %v351 = vunpack.c.l.b16 %v270
        %v352 = vunpack.c.h.b16 %v270
        %v353 = vunpack.c.l.b16 %v271
        %v354 = vunpack.c.h.b16 %v271
        %v355 = vunpack.c.l.b16 %v272
        %v356 = vunpack.c.h.b16 %v272
        %v357 = vunpack.c.l.b16 %v273
        %v358 = vunpack.c.h.b16 %v273
        %v359 = vunpack.c.l.b16 %v274
        %v360 = vunpack.c.h.b16 %v274
        %v361 = vunpack.c.l.b16 %v275
        %v362 = vunpack.c.h.b16 %v275
        %v363 = vunpack.c.l.b16 %v276
        %v364 = vunpack.c.h.b16 %v276
        %v365 = vpack.c.b16 %v325, %v321
        %v366 = vpack.c.b16 %v326, %v322
        %v367 = vpack.c.b16 %v327, %v323
        %v368 = vpack.c.b16 %v328, %v324
        %v369 = vpack.c.b16 %v333, %v329
        %v370 = vpack.c.b16 %v334, %v330
        %v371 = vpack.c.b16 %v335, %v331
        %v372 = vpack.c.b16 %v336, %v332
        %v373 = vpack.c.b16 %v341, %v337
        %v374 = vpack.c.b16 %v342, %v338
        %v375 = vpack.c.b16 %v343, %v339
        %v376 = vpack.c.b16 %v344, %v340
        %v377 = vpack.c.b16 %v349, %v345
        %v378 = vpack.c.b16 %v350, %v346
        %v379 = vpack.c.b16 %v351, %v347
        %v380 = vpack.c.b16 %v352, %v348
        %v381 = vpack.c.b16 %v357, %v353
        %v382 = vpack.c.b16 %v358, %v354
        %v383 = vpack.c.b16 %v359, %v355
        %v384 = vpack.c.b16 %v360, %v356
        %v385 = vpack.c.b16 %v361, %v361
        %v386 = vpack.c.b16 %v362, %v362
        %v387 = vpack.c.b16 %v363, %v363
        %v388 = vpack.c.b16 %v364, %v364
        %vm409 = vcmask 719872
        %v411 = vsel %vm409, %v252, 0
        %v414 = vsel %vm409, %v253, 0
        %v417 = vsel %vm409, %v254, 0
        %vm419 = vcmask 1043456
        %v421 = vsel %vm419, %v385, 0
        %v424 = vsel %vm419, %v386, 0
        %v427 = vsel %vm419, %v387, 0
        %v430 = vsel %vm419, %v388, 0
        %432 = vmatprep.subr.bf16.mxu0 0
        %433 = vmatpush1.bf16.msra.mxu0 0
        %434 = vmatprep.subr.bf16.mxu0 0
        %435 = vmatpush1.bf16.msra.mxu0 0
        %436 = vmatprep.subr.bf16.mxu0 %v424
        %437 = vmatpush1.bf16.msra.mxu0 %v421
        %438 = vmatprep.subr.bf16.mxu0 %v382
        %439 = vmatpush1.bf16.msra.mxu0 %v381
        %440 = vmatprep.subr.bf16.mxu0 %v378
        %441 = vmatpush1.bf16.msra.mxu0 %v377
        %442 = vmatprep.subr.bf16.mxu0 %v374
        %443 = vmatpush1.bf16.msra.mxu0 %v373
        %444 = vmatprep.subr.bf16.mxu0 %v370
        %445 = vmatpush1.bf16.msra.mxu0 %v369
        %446 = vmatprep.subr.bf16.mxu0 %v366
        %447 = vmatpush1.bf16.msra.mxu0 %v365
        %448 = vmatprep.subr.bf16.mxu0 0
        %449 = vmatpush2.bf16.msra.mxu0 0
        %450 = vmatprep.subr.bf16.mxu0 0
        %451 = vmatpush2.bf16.msra.mxu0 0
        %452 = vmatprep.subr.bf16.mxu0 0
        %453 = vmatpush2.bf16.msra.mxu0 0
        %454 = vmatprep.subr.bf16.mxu0 0
        %455 = vmatpush2.bf16.msra.mxu0 0
        %456 = vmatprep.subr.bf16.mxu0 0
        %457 = vmatpush2.bf16.msra.mxu0 0
        %458 = vmatprep.subr.bf16.mxu0 0
        %459 = vmatpush2.bf16.msra.mxu0 0
        %460 = vmatprep.subr.bf16.mxu0 0
        %461 = vmatpush2.bf16.msra.mxu0 0
        %462 = vmatprep.subr.bf16.mxu0 0
        %463 = vmatpush2.bf16.msra.mxu0 0
        %464 = vmatprep.mubr.bf16.mxu0 0
        %465 = vmatmul.mubr.bf16.gmra.mxu0 %v411
        %v466 = vpop.f32.mrf.mxu0
        %v467 = vadd.f32 %v282, %v466
        %v468 = vpop.f32.mrf.mxu0
        %v469 = vadd.f32 %v286, %v468
        %v470 = vpop.f32.mrf.mxu0
        %v471 = vadd.f32 %v282, %v470
        %v472 = vpop.f32.mrf.mxu0
        %v473 = vadd.f32 %v286, %v472
        %474 = vmatprep.mubr.bf16.mxu0 0
        %475 = vmatmul.mubr.bf16.gmra.mxu0 %v414
        %v476 = vpop.f32.mrf.mxu0
        %v477 = vadd.f32 %v282, %v476
        %v478 = vpop.f32.mrf.mxu0
        %v479 = vadd.f32 %v286, %v478
        %v480 = vpop.f32.mrf.mxu0
        %v481 = vadd.f32 %v282, %v480
        %v482 = vpop.f32.mrf.mxu0
        %v483 = vadd.f32 %v286, %v482
        %484 = vmatprep.mubr.bf16.mxu0 0
        %485 = vmatmul.mubr.bf16.gmra.mxu0 %v417
        %v486 = vpop.f32.mrf.mxu0
        %v487 = vadd.f32 %v282, %v486
        %v488 = vpop.f32.mrf.mxu0
        %v489 = vadd.f32 %v286, %v488
        %v490 = vpop.f32.mrf.mxu0
        %v491 = vpop.f32.mrf.mxu0
        %492 = vdwg.mxu0
        %493 = vmatprep.subr.bf16.mxu0 0
        %494 = vmatpush1.bf16.msra.mxu0 0
        %495 = vmatprep.subr.bf16.mxu0 0
        %496 = vmatpush1.bf16.msra.mxu0 0
        %497 = vmatprep.subr.bf16.mxu0 %v430
        %498 = vmatpush1.bf16.msra.mxu0 %v427
        %499 = vmatprep.subr.bf16.mxu0 %v384
        %500 = vmatpush1.bf16.msra.mxu0 %v383
        %501 = vmatprep.subr.bf16.mxu0 %v380
        %502 = vmatpush1.bf16.msra.mxu0 %v379
        %503 = vmatprep.subr.bf16.mxu0 %v376
        %504 = vmatpush1.bf16.msra.mxu0 %v375
        %505 = vmatprep.subr.bf16.mxu0 %v372
        %506 = vmatpush1.bf16.msra.mxu0 %v371
        %507 = vmatprep.subr.bf16.mxu0 %v368
        %508 = vmatpush1.bf16.msra.mxu0 %v367
        %509 = vmatprep.subr.bf16.mxu0 0
        %510 = vmatpush2.bf16.msra.mxu0 0
        %511 = vmatprep.subr.bf16.mxu0 0
        %512 = vmatpush2.bf16.msra.mxu0 0
        %513 = vmatprep.subr.bf16.mxu0 0
        %514 = vmatpush2.bf16.msra.mxu0 0
        %515 = vmatprep.subr.bf16.mxu0 0
        %516 = vmatpush2.bf16.msra.mxu0 0
        %517 = vmatprep.subr.bf16.mxu0 0
        %518 = vmatpush2.bf16.msra.mxu0 0
        %519 = vmatprep.subr.bf16.mxu0 0
        %520 = vmatpush2.bf16.msra.mxu0 0
        %521 = vmatprep.subr.bf16.mxu0 0
        %522 = vmatpush2.bf16.msra.mxu0 0
        %523 = vmatprep.subr.bf16.mxu0 0
        %524 = vmatpush2.bf16.msra.mxu0 0
        %525 = vmatprep.mubr.bf16.mxu0 0
        %526 = vmatmul.mubr.bf16.gmra.mxu0 %v411
        %v527 = vpop.f32.mrf.mxu0
        %v528 = vadd.f32 %v290, %v527
        %v529 = vpop.f32.mrf.mxu0
        %v530 = vadd.f32 %v294, %v529
        %v531 = vpop.f32.mrf.mxu0
        %v532 = vadd.f32 %v290, %v531
        %v533 = vpop.f32.mrf.mxu0
        %v534 = vadd.f32 %v294, %v533
        %535 = vmatprep.mubr.bf16.mxu0 0
        %536 = vmatmul.mubr.bf16.gmra.mxu0 %v414
        %v537 = vpop.f32.mrf.mxu0
        %v538 = vadd.f32 %v290, %v537
        %v539 = vpop.f32.mrf.mxu0
        %v540 = vadd.f32 %v294, %v539
        %v541 = vpop.f32.mrf.mxu0
        %v542 = vadd.f32 %v290, %v541
        %v543 = vpop.f32.mrf.mxu0
        %v544 = vadd.f32 %v294, %v543
        %545 = vmatprep.mubr.bf16.mxu0 0
        %546 = vmatmul.mubr.bf16.gmra.mxu0 %v417
        %v547 = vpop.f32.mrf.mxu0
        %v548 = vadd.f32 %v290, %v547
        %v549 = vpop.f32.mrf.mxu0
        %v550 = vadd.f32 %v294, %v549
        %v551 = vpop.f32.mrf.mxu0
        %v552 = vpop.f32.mrf.mxu0
        %553 = vdwg.mxu0
        %v554 = vmax.f32 %v467, 0.0
        %v555 = vmax.f32 %v469, 0.0
        %v556 = vmax.f32 %v528, 0.0
        %v557 = vmax.f32 %v530, 0.0
        %v558 = vmax.f32 %v471, 0.0
        %v559 = vmax.f32 %v473, 0.0
        %v560 = vmax.f32 %v532, 0.0
        %v561 = vmax.f32 %v534, 0.0
        %v562 = vmax.f32 %v477, 0.0
        %v563 = vmax.f32 %v479, 0.0
        %v564 = vmax.f32 %v538, 0.0
        %v565 = vmax.f32 %v540, 0.0
        %v566 = vmax.f32 %v481, 0.0
        %v567 = vmax.f32 %v483, 0.0
        %v568 = vmax.f32 %v542, 0.0
        %v569 = vmax.f32 %v544, 0.0
        %v570 = vmax.f32 %v487, 0.0
        %v571 = vmax.f32 %v489, 0.0
        %v572 = vmax.f32 %v548, 0.0
        %v573 = vmax.f32 %v550, 0.0
        %v574 = vpack.c.bf16 %v558, %v554
        %v575 = vpack.c.bf16 %v559, %v555
        %v576 = vpack.c.bf16 %v560, %v556
        %v577 = vpack.c.bf16 %v561, %v557
        %v578 = vpack.c.bf16 %v566, %v562
        %v579 = vpack.c.bf16 %v567, %v563
        %v580 = vpack.c.bf16 %v568, %v564
        %v581 = vpack.c.bf16 %v569, %v565
        %v582 = vpack.c.bf16 %v570, %v570
        %v583 = vpack.c.bf16 %v571, %v571
        %v584 = vpack.c.bf16 %v572, %v572
        %v585 = vpack.c.bf16 %v573, %v573
        %v586 = vld [vmem:[%s3] sm:$0xf]
        %v587 = vld [vmem:[%s3 + $0x4] sm:$0xf]
        %v588 = vld [vmem:[%s3 + $0x8] sm:$0xf]
        %v589 = vld [vmem:[%s3 + $0xc] sm:$0xf]
        %v590 = vld [vmem:[%s3 + $0x10] sm:$0xf]
        %v591 = vld [vmem:[%s3 + $0x14] sm:$0xf]
        %v592 = vld [vmem:[%s3 + $0x18] sm:$0xf]
        %v593 = vld [vmem:[%s3 + $0x1c] sm:$0xf]
        %v594 = vld [vmem:[%s3 + $0x20] sm:$0xf]
        %v595 = vld [vmem:[%s3 + $0x24] sm:$0xf]
        %v596 = vld [vmem:[%s3 + $0x28] sm:$0xf]
        %v597 = vld [vmem:[%s3 + $0x2c] sm:$0xf]
        %v598 = vld [vmem:[%s3 + $0x30] sm:$0xf]
        %v599 = vld [vmem:[%s3 + $0x34] sm:$0xf]
        %v600 = vld [vmem:[%s3 + $0x38] sm:$0xf]
        %v601 = vld [vmem:[%s3 + $0x3c] sm:$0xf]
        %v602 = vld [vmem:[%s3 + $0x40] sm:$0xf]
        %v603 = vld [vmem:[%s3 + $0x44] sm:$0xf]
        %v604 = vld [vmem:[%s3 + $0x48] sm:$0xf]
        %v605 = vld [vmem:[%s3 + $0x4c] sm:$0xf]
        %v606 = vld [vmem:[%s3 + $0x50] sm:$0xf]
        %v607 = vld [vmem:[%s3 + $0x54] sm:$0xf]
        %v608 = vld [vmem:[%s3 + $0x58] sm:$0xf]
        %v609 = vld [vmem:[%s3 + $0x5c] sm:$0xf]
        %v610 = vld [vmem:[%s3 + $0x60] sm:$0xf]
        %v611 = vld [vmem:[%s3 + $0x64] sm:$0xf]
        %v612 = vld [vmem:[%s3 + $0x68] sm:$0xf]
        %v613 = vld [vmem:[%s3 + $0x6c] sm:$0xf]
        %v614 = vld [vmem:[%s3 + $0x70] sm:$0xf]
        %v615 = vld [vmem:[%s3 + $0x74] sm:$0xf]
        %v616 = vld [vmem:[%s3 + $0x78] sm:$0xf]
        %v617 = vld [vmem:[%s3 + $0x7c] sm:$0xf]
        %v618 = vld [vmem:[%s3 + $0x80] sm:$0xf]
        %v619 = vld [vmem:[%s3 + $0x84] sm:$0xf]
        %v620 = vld [vmem:[%s3 + $0x88] sm:$0xf]
        %v621 = vld [vmem:[%s3 + $0x8c] sm:$0xf]
        %v622 = vld [vmem:[%s3 + $0x90] sm:$0xf]
        %v623 = vld [vmem:[%s3 + $0x94] sm:$0xf]
        %v624 = vld [vmem:[%s3 + $0x98] sm:$0xf]
        %v625 = vld [vmem:[%s3 + $0x9c] sm:$0xf]
        %v626 = vld [vmem:[%s3 + $0xa0] sm:$0xf]
        %v627 = vld [vmem:[%s3 + $0xa4] sm:$0xf]
        %v628 = vld [vmem:[%s3 + $0xa8] sm:$0xf]
        %v629 = vld [vmem:[%s3 + $0xac] sm:$0xf]
        %v630 = vld [vmem:[%s3 + $0xb0] sm:$0xf]
        %v631 = vld [vmem:[%s3 + $0xb4] sm:$0xf]
        %v632 = vld [vmem:[%s3 + $0xb8] sm:$0xf]
        %v633 = vld [vmem:[%s3 + $0xbc] sm:$0xf]
        %v634 = vld [vmem:[%s3 + $0xc0] sm:$0xf]
        %v635 = vld [vmem:[%s3 + $0xc4] sm:$0xf]
        %v636 = vld [vmem:[%s3 + $0xc8] sm:$0xf]
        %v637 = vld [vmem:[%s3 + $0xcc] sm:$0xf]
        %v638 = vld [vmem:[%s3 + $0xd0] sm:$0xf]
        %v639 = vld [vmem:[%s3 + $0xd4] sm:$0xf]
        %v640 = vld [vmem:[%s3 + $0xd8] sm:$0xf]
        %v641 = vld [vmem:[%s3 + $0xdc] sm:$0xf]
        %v642 = vld [vmem:[%s3 + $0xe0] sm:$0xf]
        %v643 = vld [vmem:[%s3 + $0xe4] sm:$0xf]
        %v644 = vld [vmem:[%s3 + $0xe8] sm:$0xf]
        %v645 = vld [vmem:[%s3 + $0xec] sm:$0xf]
        %v646 = vld [vmem:[%s3 + $0xf0] sm:$0xf]
        %v647 = vld [vmem:[%s3 + $0xf4] sm:$0xf]
        %v648 = vld [vmem:[%s3 + $0xf8] sm:$0xf]
        %v649 = vld [vmem:[%s3 + $0xfc] sm:$0xf]
        %v650 = vld [vmem:[%s4] sm:$0x1]
        %v652 = vlaneseq
        %v653 = vshrl.u32 %v652, 7
        %v654 = vsub.s32 0, %v653
        %v655 = vrot.slane %v650, %v654
        %v721 = vunpack.c.l.b16 %v586
        %v722 = vunpack.c.l.b16 %v587
        %v723 = vunpack.c.l.b16 %v588
        %v724 = vunpack.c.l.b16 %v589
        %v725 = vunpack.c.l.b16 %v590
        %v726 = vunpack.c.l.b16 %v591
        %v727 = vunpack.c.l.b16 %v592
        %v728 = vunpack.c.l.b16 %v593
        %v729 = vunpack.c.l.b16 %v594
        %v730 = vunpack.c.l.b16 %v595
        %v731 = vunpack.c.l.b16 %v596
        %v732 = vunpack.c.l.b16 %v597
        %v733 = vunpack.c.l.b16 %v598
        %v734 = vunpack.c.l.b16 %v599
        %v735 = vunpack.c.l.b16 %v600
        %v736 = vunpack.c.l.b16 %v601
        %v737 = vunpack.c.l.b16 %v602
        %v738 = vunpack.c.l.b16 %v603
        %v739 = vunpack.c.l.b16 %v604
        %v740 = vunpack.c.l.b16 %v605
        %v741 = vunpack.c.l.b16 %v606
        %v742 = vunpack.c.l.b16 %v607
        %v743 = vunpack.c.l.b16 %v608
        %v744 = vunpack.c.l.b16 %v609
        %v745 = vunpack.c.l.b16 %v610
        %v746 = vunpack.c.l.b16 %v611
        %v747 = vunpack.c.l.b16 %v612
        %v748 = vunpack.c.l.b16 %v613
        %v749 = vunpack.c.l.b16 %v614
        %v750 = vunpack.c.l.b16 %v615
        %v751 = vunpack.c.l.b16 %v616
        %v752 = vunpack.c.l.b16 %v617
        %v753 = vunpack.c.l.b16 %v618
        %v754 = vunpack.c.l.b16 %v619
        %v755 = vunpack.c.l.b16 %v620
        %v756 = vunpack.c.l.b16 %v621
        %v757 = vunpack.c.l.b16 %v622
        %v758 = vunpack.c.l.b16 %v623
        %v759 = vunpack.c.l.b16 %v624
        %v760 = vunpack.c.l.b16 %v625
        %v761 = vunpack.c.l.b16 %v626
        %v762 = vunpack.c.l.b16 %v627
        %v763 = vunpack.c.l.b16 %v628
        %v764 = vunpack.c.l.b16 %v629
        %v765 = vunpack.c.l.b16 %v630
        %v766 = vunpack.c.l.b16 %v631
        %v767 = vunpack.c.l.b16 %v632
        %v768 = vunpack.c.l.b16 %v633
        %v769 = vunpack.c.l.b16 %v634
        %v770 = vunpack.c.l.b16 %v635
        %v771 = vunpack.c.l.b16 %v636
        %v772 = vunpack.c.l.b16 %v637
        %v773 = vunpack.c.l.b16 %v638
        %v774 = vunpack.c.l.b16 %v639
        %v775 = vunpack.c.l.b16 %v640
        %v776 = vunpack.c.l.b16 %v641
        %v777 = vunpack.c.l.b16 %v642
        %v778 = vunpack.c.l.b16 %v643
        %v779 = vunpack.c.l.b16 %v644
        %v780 = vunpack.c.l.b16 %v645
        %v781 = vunpack.c.l.b16 %v646
        %v782 = vunpack.c.l.b16 %v647
        %v783 = vunpack.c.l.b16 %v648
        %v784 = vunpack.c.l.b16 %v649
        %v785 = vpack.c.b16 %v722, %v721
        %v786 = vpack.c.b16 %v724, %v723
        %v787 = vpack.c.b16 %v726, %v725
        %v788 = vpack.c.b16 %v728, %v727
        %v789 = vpack.c.b16 %v730, %v729
        %v790 = vpack.c.b16 %v732, %v731
        %v791 = vpack.c.b16 %v734, %v733
        %v792 = vpack.c.b16 %v736, %v735
        %v793 = vpack.c.b16 %v738, %v737
        %v794 = vpack.c.b16 %v740, %v739
        %v795 = vpack.c.b16 %v742, %v741
        %v796 = vpack.c.b16 %v744, %v743
        %v797 = vpack.c.b16 %v746, %v745
        %v798 = vpack.c.b16 %v748, %v747
        %v799 = vpack.c.b16 %v750, %v749
        %v800 = vpack.c.b16 %v752, %v751
        %v801 = vpack.c.b16 %v754, %v753
        %v802 = vpack.c.b16 %v756, %v755
        %v803 = vpack.c.b16 %v758, %v757
        %v804 = vpack.c.b16 %v760, %v759
        %v805 = vpack.c.b16 %v762, %v761
        %v806 = vpack.c.b16 %v764, %v763
        %v807 = vpack.c.b16 %v766, %v765
        %v808 = vpack.c.b16 %v768, %v767
        %v809 = vpack.c.b16 %v770, %v769
        %v810 = vpack.c.b16 %v772, %v771
        %v811 = vpack.c.b16 %v774, %v773
        %v812 = vpack.c.b16 %v776, %v775
        %v813 = vpack.c.b16 %v778, %v777
        %v814 = vpack.c.b16 %v780, %v779
        %v815 = vpack.c.b16 %v782, %v781
        %v816 = vpack.c.b16 %v784, %v783
        %849 = vmatprep.subr.bf16.mxu0 0
        %850 = vmatpush1.bf16.msra.mxu0 %v792
        %851 = vmatprep.subr.bf16.mxu0 0
        %852 = vmatpush1.bf16.msra.mxu0 %v791
        %853 = vmatprep.subr.bf16.mxu0 0
        %854 = vmatpush1.bf16.msra.mxu0 %v790
        %855 = vmatprep.subr.bf16.mxu0 0
        %856 = vmatpush1.bf16.msra.mxu0 %v789
        %857 = vmatprep.subr.bf16.mxu0 0
        %858 = vmatpush1.bf16.msra.mxu0 %v788
        %859 = vmatprep.subr.bf16.mxu0 0
        %860 = vmatpush1.bf16.msra.mxu0 %v787
        %861 = vmatprep.subr.bf16.mxu0 0
        %862 = vmatpush1.bf16.msra.mxu0 %v786
        %863 = vmatprep.subr.bf16.mxu0 0
        %864 = vmatpush1.bf16.msra.mxu0 %v785
        %865 = vmatprep.subr.bf16.mxu0 0
        %866 = vmatpush2.bf16.msra.mxu0 %v800
        %867 = vmatprep.subr.bf16.mxu0 0
        %868 = vmatpush2.bf16.msra.mxu0 %v799
        %869 = vmatprep.subr.bf16.mxu0 0
        %870 = vmatpush2.bf16.msra.mxu0 %v798
        %871 = vmatprep.subr.bf16.mxu0 0
        %872 = vmatpush2.bf16.msra.mxu0 %v797
        %873 = vmatprep.subr.bf16.mxu0 0
        %874 = vmatpush2.bf16.msra.mxu0 %v796
        %875 = vmatprep.subr.bf16.mxu0 0
        %876 = vmatpush2.bf16.msra.mxu0 %v795
        %877 = vmatprep.subr.bf16.mxu0 0
        %878 = vmatpush2.bf16.msra.mxu0 %v794
        %879 = vmatprep.subr.bf16.mxu0 0
        %880 = vmatpush2.bf16.msra.mxu0 %v793
        %881 = vmatprep.mubr.bf16.mxu0 %v575
        %882 = vmatmul.mubr.bf16.gmra.mxu0 %v574
        %v883 = vpop.f32.mrf.mxu0
        %v884 = vadd.f32 %v655, %v883
        %v885 = vpop.f32.mrf.mxu0
        %v886 = vpop.f32.mrf.mxu0
        %v887 = vadd.f32 %v655, %v886
        %v888 = vpop.f32.mrf.mxu0
        %889 = vmatprep.mubr.bf16.mxu0 %v579
        %890 = vmatmul.mubr.bf16.gmra.mxu0 %v578
        %v891 = vpop.f32.mrf.mxu0
        %v892 = vadd.f32 %v655, %v891
        %v893 = vpop.f32.mrf.mxu0
        %v894 = vpop.f32.mrf.mxu0
        %v895 = vadd.f32 %v655, %v894
        %v896 = vpop.f32.mrf.mxu0
        %897 = vmatprep.mubr.bf16.mxu0 %v583
        %898 = vmatmul.mubr.bf16.gmra.mxu0 %v582
        %v899 = vpop.f32.mrf.mxu0
        %v900 = vadd.f32 %v655, %v899
        %v901 = vpop.f32.mrf.mxu0
        %v902 = vpop.f32.mrf.mxu0
        %v903 = vpop.f32.mrf.mxu0
        %904 = vdwg.mxu0
        %905 = vmatprep.subr.bf16.mxu0 0
        %906 = vmatpush1.bf16.msra.mxu0 %v808
        %907 = vmatprep.subr.bf16.mxu0 0
        %908 = vmatpush1.bf16.msra.mxu0 %v807
        %909 = vmatprep.subr.bf16.mxu0 0
        %910 = vmatpush1.bf16.msra.mxu0 %v806
        %911 = vmatprep.subr.bf16.mxu0 0
        %912 = vmatpush1.bf16.msra.mxu0 %v805
        %913 = vmatprep.subr.bf16.mxu0 0
        %914 = vmatpush1.bf16.msra.mxu0 %v804
        %915 = vmatprep.subr.bf16.mxu0 0
        %916 = vmatpush1.bf16.msra.mxu0 %v803
        %917 = vmatprep.subr.bf16.mxu0 0
        %918 = vmatpush1.bf16.msra.mxu0 %v802
        %919 = vmatprep.subr.bf16.mxu0 0
        %920 = vmatpush1.bf16.msra.mxu0 %v801
        %921 = vmatprep.subr.bf16.mxu0 0
        %922 = vmatpush2.bf16.msra.mxu0 %v816
        %923 = vmatprep.subr.bf16.mxu0 0
        %924 = vmatpush2.bf16.msra.mxu0 %v815
        %925 = vmatprep.subr.bf16.mxu0 0
        %926 = vmatpush2.bf16.msra.mxu0 %v814
        %927 = vmatprep.subr.bf16.mxu0 0
        %928 = vmatpush2.bf16.msra.mxu0 %v813
        %929 = vmatprep.subr.bf16.mxu0 0
        %930 = vmatpush2.bf16.msra.mxu0 %v812
        %931 = vmatprep.subr.bf16.mxu0 0
        %932 = vmatpush2.bf16.msra.mxu0 %v811
        %933 = vmatprep.subr.bf16.mxu0 0
        %934 = vmatpush2.bf16.msra.mxu0 %v810
        %935 = vmatprep.subr.bf16.mxu0 0
        %936 = vmatpush2.bf16.msra.mxu0 %v809
        %937 = vmatprep.mubr.bf16.mxu0 %v577
        %938 = vmatmul.mubr.bf16.gmra.mxu0 %v576
        %v939 = vpop.f32.mrf.mxu0
        %v940 = vadd.f32 %v884, %v939
        %v941 = vpop.f32.mrf.mxu0
        %v942 = vpop.f32.mrf.mxu0
        %v943 = vadd.f32 %v887, %v942
        %v944 = vpop.f32.mrf.mxu0
        %945 = vmatprep.mubr.bf16.mxu0 %v581
        %946 = vmatmul.mubr.bf16.gmra.mxu0 %v580
        %v947 = vpop.f32.mrf.mxu0
        %v948 = vadd.f32 %v892, %v947
        %v949 = vpop.f32.mrf.mxu0
        %v950 = vpop.f32.mrf.mxu0
        %v951 = vadd.f32 %v895, %v950
        %v952 = vpop.f32.mrf.mxu0
        %953 = vmatprep.mubr.bf16.mxu0 %v585
        %954 = vmatmul.mubr.bf16.gmra.mxu0 %v584
        %v955 = vpop.f32.mrf.mxu0
        %v956 = vadd.f32 %v900, %v955
        %v957 = vpop.f32.mrf.mxu0
        %v958 = vpop.f32.mrf.mxu0
        %v959 = vpop.f32.mrf.mxu0
        %960 = vdwg.mxu0
        %v961 = vmax.f32 %v940, 0.0
        %v962 = vmax.f32 %v943, 0.0
        %v963 = vmax.f32 %v948, 0.0
        %v964 = vmax.f32 %v951, 0.0
        %v965 = vmax.f32 %v956, 0.0
        %v966 = vpack.c.bf16 %v962, %v961
        %v967 = vpack.c.bf16 %v964, %v963
        %v968 = vpack.c.bf16 %v965, %v965
        %v972 = vunpack.c.l.b16 %v966
        %v973 = vunpack.c.h.b16 %v966
        %v974 = vunpack.c.l.b16 %v967
        %v975 = vunpack.c.h.b16 %v967
        %v976 = vunpack.c.l.b16 %v968
        %v977 = vpack.c.b16 %v972, %v972
        %v978 = vpack.c.b16 %v973, %v973
        %v979 = vpack.c.b16 %v974, %v974
        %v980 = vpack.c.b16 %v975, %v975
        %v981 = vpack.c.b16 %v976, %v976
        %987 = vst [vmem:[%s226] sm:$0xf] %v977
        %988 = vst [vmem:[%s226 + $0x4] sm:$0xf] %v978
        %989 = vst [vmem:[%s226 + $0x8] sm:$0xf] %v979
        %990 = vst [vmem:[%s226 + $0xc] sm:$0xf] %v980
        %991 = vst [vmem:[%s226 + $0x10] sm:$0xf] %v981
        %s992 = sand.u32 %s134, 1
        %s993 = sand.u32 %s134, 1
        %s994 = smul.addr %s993, 20
        %s995 = scalar_lea.vmem [#allocation2], %s994
        // Predicated region
        $region41: #{_lambda_.1} parent=39 // pred_check
          %p996 = pneg %p144
        $region42: #{_lambda_.1} parent=39 // pred_check_branch
          %998 = sbr.rel (%p996) target = $region44
        $region43: #{_lambda_.1} parent=39 // pred_region
          %s999 = smul.u32 5, %s16
          %s1000 = ssub.s32 9, %s999
          %p1001 = scmp.lt.s32.totalorder %s1000, 5
          %s1002 = scalar_select %p1001, %s1000, 5
          %s1003 = smul.u32 64, %s1002
          %p1004 = scmp.ne.s32.totalorder 0, %s1003
          %s1005 = smul.addr %s999, 4
          %s1006 = scalar_lea.vmem %s5, %s1005
          // Predicated region
          $region45: #{_lambda_.1} parent=43 // pred_check
            %p1007 = pneg %p1004
          $region46: #{_lambda_.1} parent=43 // pred_check_branch
            %1009 = sbr.rel (%p1007) target = $region48
          $region47: #{_lambda_.1} parent=43 // pred_region
            // Predicated region
            $region49: #{_lambda_.1} parent=47 // pred_check
              _
            $region50: #{_lambda_.1} parent=47 // pred_check_branch
              %1011 = sbr.rel target = $region52
            $region51: #{_lambda_.1} parent=47 // pred_region
              // Predicated region
              $region71: #{_lambda_.1} parent=51 // pred_check
                _
              $region72: #{_lambda_.1} parent=51 // pred_check_branch
                %1070 = sbr.rel (0) target = $region74
              $region73: #{_lambda_.1} parent=51 // pred_region
                %s1072 = ssub.s32 16, 1
                %s1073 = sdiv.u32.pop %s1002, 5
                %s1074 = srem.u32.pop %s1002, 5
                // While loop
                $region75: #{_lambda_.1} parent=73 // loop_pre_header
                  _
                $region76: #{_lambda_.1} parent=73 // loop_header
                  %s1076 = sphi 0, %s1078
                  %p1077 = scmp.ge.s32.totalorder %s1076, %s1073
                  %s1081 = sphi 0, %s1096
                  %s1082 = sphi %s995, %s1099
                  %s1083 = sphi %s1006, %s1100
                $region77: #{_lambda_.1} parent=73 // loop_header_branch
                  %1080 = sbr.rel (%p1077) target = $region81
                $region78: #{_lambda_.1} parent=73 // loop_body
                  %v1084 = vld [vmem:[%s1082] sm:%s1072]
                  %1085 = vst [vmem:[%s1083] sm:%s1072] %v1084
                  %v1086 = vld [vmem:[%s1082 + $0x4] sm:%s1072]
                  %1087 = vst [vmem:[%s1083 + $0x4] sm:%s1072] %v1086
                  %v1088 = vld [vmem:[%s1082 + $0x8] sm:%s1072]
                  %1089 = vst [vmem:[%s1083 + $0x8] sm:%s1072] %v1088
                  %v1090 = vld [vmem:[%s1082 + $0xc] sm:%s1072]
                  %1091 = vst [vmem:[%s1083 + $0xc] sm:%s1072] %v1090
                  %v1092 = vld [vmem:[%s1082 + $0x10] sm:%s1072]
                  %1093 = vst [vmem:[%s1083 + $0x10] sm:%s1072] %v1092
                  %s1094 = sadd.s32 1, %s1081
                  %p1095 = scmp.ge.s32.totalorder %s1094, %s1073
                  %s1096 = scalar_select %p1095, 0, %s1094
                  %s1097 = smul.u32 %s1096, 20
                  %s1098 = smul.u32 %s1096, 20
                  %s1099 = scalar_lea.vmem %s995, %s1097 [#allocation2]
                  %s1100 = scalar_lea.vmem %s1006, %s1098
                $region79: #{_lambda_.1} parent=73 // loop_footer
                  %s1078 = sadd.s32 %s1076, 1
                $region80: #{_lambda_.1} parent=73 // loop_footer_branch
                  %1075 = sbr.rel target = $region76
                $region81: #{_lambda_.1} parent=73 // loop_exit
                  _
                %s1101 = sdiv.u32.pop %s1002, 5
                %s1102 = srem.u32.pop %s1002, 5
                %s1103 = smul.u32 %s1101, 5
                %s1104 = smul.u32 4, %s1103
                %s1105 = scalar_lea.vmem %s995, %s1104 [#allocation2]
                %s1106 = smul.u32 4, %s1103
                %s1107 = scalar_lea.vmem %s1006, %s1106
                // While loop
                $region82: #{_lambda_.1} parent=73 // loop_pre_header
                  _
                $region83: #{_lambda_.1} parent=73 // loop_header
                  %s1109 = sphi 0, %s1111
                  %p1110 = scmp.ge.s32.totalorder %s1109, %s1102
                  %s1114 = sphi 0, %s1121
                  %s1115 = sphi %s1105, %s1124
                  %s1116 = sphi %s1107, %s1125
                $region84: #{_lambda_.1} parent=73 // loop_header_branch
                  %1113 = sbr.rel (%p1110) target = $region88
                $region85: #{_lambda_.1} parent=73 // loop_body
                  %v1117 = vld [vmem:[%s1115] sm:%s1072]
                  %1118 = vst [vmem:[%s1116] sm:%s1072] %v1117
                  %s1119 = sadd.s32 1, %s1114
                  %p1120 = scmp.ge.s32.totalorder %s1119, %s1102
                  %s1121 = scalar_select %p1120, 0, %s1119
                  %s1122 = smul.u32 %s1121, 4
                  %s1123 = smul.u32 %s1121, 4
                  %s1124 = scalar_lea.vmem %s1105, %s1122 [#allocation2]
                  %s1125 = scalar_lea.vmem %s1107, %s1123
                $region86: #{_lambda_.1} parent=73 // loop_footer
                  %s1111 = sadd.s32 %s1109, 1
                $region87: #{_lambda_.1} parent=73 // loop_footer_branch
                  %1108 = sbr.rel target = $region83
                $region88: #{_lambda_.1} parent=73 // loop_exit
                  _
              $region74: #{_lambda_.1} parent=51 // pred_fallthru
                _
            $region52: #{_lambda_.1} parent=47 // pred_fallthru
              _
            // Predicated region
            $region53: #{_lambda_.1} parent=47 // pred_check
              _
            $region54: #{_lambda_.1} parent=47 // pred_check_branch
              %1013 = sbr.rel (0) target = $region56
            $region55: #{_lambda_.1} parent=47 // pred_region
              %s1015 = ssub.s32 16, 1
              %s1016 = sdiv.u32.pop %s1002, 5
              %s1017 = srem.u32.pop %s1002, 5
              // While loop
              $region57: #{_lambda_.1} parent=55 // loop_pre_header
                _
              $region58: #{_lambda_.1} parent=55 // loop_header
                %s1019 = sphi 0, %s1021
                %p1020 = scmp.ge.s32.totalorder %s1019, %s1016
                %s1024 = sphi 0, %s1039
                %s1025 = sphi %s995, %s1042
                %s1026 = sphi %s1006, %s1043
              $region59: #{_lambda_.1} parent=55 // loop_header_branch
                %1023 = sbr.rel (%p1020) target = $region63
              $region60: #{_lambda_.1} parent=55 // loop_body
                %v1027 = vld [vmem:[%s1025] sm:%s1015]
                %1028 = vst [vmem:[%s1026] sm:%s1015] %v1027
                %v1029 = vld [vmem:[%s1025 + $0x4] sm:%s1015]
                %1030 = vst [vmem:[%s1026 + $0x4] sm:%s1015] %v1029
                %v1031 = vld [vmem:[%s1025 + $0x8] sm:%s1015]
                %1032 = vst [vmem:[%s1026 + $0x8] sm:%s1015] %v1031
                %v1033 = vld [vmem:[%s1025 + $0xc] sm:%s1015]
                %1034 = vst [vmem:[%s1026 + $0xc] sm:%s1015] %v1033
                %v1035 = vld [vmem:[%s1025 + $0x10] sm:%s1015]
                %1036 = vst [vmem:[%s1026 + $0x10] sm:%s1015] %v1035
                %s1037 = sadd.s32 1, %s1024
                %p1038 = scmp.ge.s32.totalorder %s1037, %s1016
                %s1039 = scalar_select %p1038, 0, %s1037
                %s1040 = smul.u32 %s1039, 20
                %s1041 = smul.u32 %s1039, 20
                %s1042 = scalar_lea.vmem %s995, %s1040 [#allocation2]
                %s1043 = scalar_lea.vmem %s1006, %s1041
              $region61: #{_lambda_.1} parent=55 // loop_footer
                %s1021 = sadd.s32 %s1019, 1
              $region62: #{_lambda_.1} parent=55 // loop_footer_branch
                %1018 = sbr.rel target = $region58
              $region63: #{_lambda_.1} parent=55 // loop_exit
                _
              %s1044 = sdiv.u32.pop %s1002, 5
              %s1045 = srem.u32.pop %s1002, 5
              %s1046 = smul.u32 %s1044, 5
              %s1047 = smul.u32 4, %s1046
              %s1048 = scalar_lea.vmem %s995, %s1047 [#allocation2]
              %s1049 = smul.u32 4, %s1046
              %s1050 = scalar_lea.vmem %s1006, %s1049
              // While loop
              $region64: #{_lambda_.1} parent=55 // loop_pre_header
                _
              $region65: #{_lambda_.1} parent=55 // loop_header
                %s1052 = sphi 0, %s1054
                %p1053 = scmp.ge.s32.totalorder %s1052, %s1045
                %s1057 = sphi 0, %s1064
                %s1058 = sphi %s1048, %s1067
                %s1059 = sphi %s1050, %s1068
              $region66: #{_lambda_.1} parent=55 // loop_header_branch
                %1056 = sbr.rel (%p1053) target = $region70
              $region67: #{_lambda_.1} parent=55 // loop_body
                %v1060 = vld [vmem:[%s1058] sm:%s1015]
                %1061 = vst [vmem:[%s1059] sm:%s1015] %v1060
                %s1062 = sadd.s32 1, %s1057
                %p1063 = scmp.ge.s32.totalorder %s1062, %s1045
                %s1064 = scalar_select %p1063, 0, %s1062
                %s1065 = smul.u32 %s1064, 4
                %s1066 = smul.u32 %s1064, 4
                %s1067 = scalar_lea.vmem %s1048, %s1065 [#allocation2]
                %s1068 = scalar_lea.vmem %s1050, %s1066
              $region68: #{_lambda_.1} parent=55 // loop_footer
                %s1054 = sadd.s32 %s1052, 1
              $region69: #{_lambda_.1} parent=55 // loop_footer_branch
                %1051 = sbr.rel target = $region65
              $region70: #{_lambda_.1} parent=55 // loop_exit
                _
            $region56: #{_lambda_.1} parent=47 // pred_fallthru
              _
          $region48: #{_lambda_.1} parent=43 // pred_fallthru
            _
          %1126 = vnop
        $region44: #{_lambda_.1} parent=39 // pred_fallthru
          _
      $region40: #{_lambda_.1} parent=5 // pred_fallthru
        _
      %p1127 = scmp.le.s32.totalorder 2, %s11
      // Predicated region
      $region89: #{_lambda_.1} parent=5 // pred_check
        %p1128 = pneg %p1127
      $region90: #{_lambda_.1} parent=5 // pred_check_branch
        %1130 = sbr.rel (%p1128) target = $region92
      $region91: #{_lambda_.1} parent=5 // pred_region
        %s1131 = ssub.s32 %s11, 2
        // Predicated region
        $region93: #{_lambda_.1} parent=91 // pred_check
          %p1132 = pneg %p150
        $region94: #{_lambda_.1} parent=91 // pred_check_branch
          %1134 = sbr.rel (%p1132) target = $region96
        $region95: #{_lambda_.1} parent=91 // pred_region
          %s1135 = sand.u32 %s135, 1
          %s1136 = sand.u32 %s135, 1
          %s1137 = smul.addr %s1136, 20
          %s1138 = scalar_lea.vmem [#allocation2], %s1137
        $region96: #{_lambda_.1} parent=91 // pred_fallthru
          _
      $region92: #{_lambda_.1} parent=5 // pred_fallthru
        _
    $region6: #{_lambda_.1} parent=1 // loop_footer
      %s15 = sadd.s32 1, %s11
    $region7: #{_lambda_.1} parent=1 // loop_footer_branch
      %10 = sbr.rel target = $region3
    $region8: #{_lambda_.1} parent=1 // loop_exit
      _

</llo_original>
